<compile_context>
chip_gen: v7x
topology: tpu7x:2x2x1
jax: 0.10.0
libtpu: 0.0.40
codegen_flags: <defaults>
</compile_context>

<pallas_src>
import jax
import jax.numpy as jnp
from jax.experimental import pallas as pl
from jax.experimental.pallas import tpu as pltpu

NUM_INSTRUMENT_CLASSES = 2
INPUT_DIM = 256
HIDDEN_DIM = 128
MAX_TILE_B = 1024   # batch tile for large batches (multiple of 128)


def _mlp_kernel(x_ref, w1_ref, b1_ref, w2_ref, b2_ref, w3_ref, b3_ref, o_ref):
    # Layer 1: Linear + ReLU  (MXU matmul, f32 accumulate, VPU max)
    h1 = jnp.dot(x_ref[...], w1_ref[...], preferred_element_type=jnp.float32)
    h1 = jnp.maximum(h1 + b1_ref[...], 0.0)
    # Layer 2: Linear + ReLU
    h2 = jnp.dot(h1, w2_ref[...], preferred_element_type=jnp.float32)
    h2 = jnp.maximum(h2 + b2_ref[...], 0.0)
    # Layer 3: Linear -> narrow (tb, 2) logits, written directly (no padding).
    logits = jnp.dot(h2, w3_ref[...], preferred_element_type=jnp.float32)
    o_ref[...] = (logits + b3_ref[...]).astype(o_ref.dtype)


def _round_up(x, m):
    return ((x + m - 1) // m) * m


@jax.jit
def discriminator_forward(emb, params):
    """emb: [B, INPUT_DIM] float32 -> [B, NUM_INSTRUMENT_CLASSES] float32."""
    w1, b1, w2, b2, w3, b3 = params
    B = emb.shape[0]

    # Batch tile selection:
    #  * large batches: fixed 1024-row tiles (multiple of 128).
    #  * small / medium batches: split into >= 2 tiles (rounded to a multiple
    #    of 8 for the sublane rule) so v7x megacore gets both TensorCores busy.
    if B >= 2 * MAX_TILE_B:
        tb = MAX_TILE_B
    else:
        tb = min(_round_up(max(pl.cdiv(B, 2), 1), 8), MAX_TILE_B)

    grid = (pl.cdiv(B, tb),)   # partial trailing block handled by Pallas

    # Weights/biases: same block every grid step -> resident in VMEM,
    # DMA'd only once.
    resident = lambda arr: pl.BlockSpec(arr.shape, lambda i: (0, 0))

    out = pl.pallas_call(
        _mlp_kernel,
        out_shape=jax.ShapeDtypeStruct((B, NUM_INSTRUMENT_CLASSES), jnp.float32),
        grid=grid,
        in_specs=[
            pl.BlockSpec((tb, INPUT_DIM), lambda i: (i, 0)),   # streamed x tile
            resident(w1), resident(b1),
            resident(w2), resident(b2),
            resident(w3), resident(b3),
        ],
        # Last block dim equals the full array dim (2) -> valid narrow block.
        out_specs=pl.BlockSpec((tb, NUM_INSTRUMENT_CLASSES), lambda i: (i, 0)),
        compiler_params=pltpu.CompilerParams(
            # Batch tiles are independent -> shard across TCs on v7x megacore.
            dimension_semantics=("parallel",),
        ),
    )(emb, w1, b1, w2, b2, w3, b3)
    return out


def init_params(key):
    """Deterministic init matching PyTorch nn.Linear default:
    U(-1/sqrt(fan_in), 1/sqrt(fan_in)) for both weight and bias."""
    def linear(k, fan_in, fan_out):
        kw, kb = jax.random.split(k)
        bound = 1.0 / jnp.sqrt(fan_in)
        # Stored as [in, out] (transposed vs. PyTorch's [out, in]).
        w = jax.random.uniform(kw, (fan_in, fan_out), jnp.float32, -bound, bound)
        b = jax.random.uniform(kb, (1, fan_out), jnp.float32, -bound, bound)
        return w, b

    k1, k2, k3 = jax.random.split(key, 3)
    w1, b1 = linear(k1, INPUT_DIM, HIDDEN_DIM)
    w2, b2 = linear(k2, HIDDEN_DIM, HIDDEN_DIM)
    w3, b3 = linear(k3, HIDDEN_DIM, NUM_INSTRUMENT_CLASSES)
    return (w1, b1, w2, b2, w3, b3)


def reference_forward(emb, params):
    """Pure-JAX reference matching the PyTorch forward semantics."""
    w1, b1, w2, b2, w3, b3 = params
    h = jnp.maximum(emb @ w1 + b1, 0.0)
    h = jnp.maximum(h @ w2 + b2, 0.0)
    return h @ w3 + b3


if __name__ == "__main__":
    key = jax.random.PRNGKey(0)
    k_params, k_x1, k_x2 = jax.random.split(key, 3)

    params = init_params(k_params)

    # Small demo batch (splits into 2 tiny tiles).
    batch = 8
    emb = jax.random.normal(k_x1, (batch, INPUT_DIM), jnp.float32)
    out = jax.block_until_ready(discriminator_forward(emb, params))
    ref = reference_forward(emb, params)
    assert out.shape == (batch, NUM_INSTRUMENT_CLASSES)
    assert jnp.allclose(out, ref, atol=1e-5, rtol=1e-5)

    # Larger, non-multiple batch exercising the partial trailing block path
    # (no host-side padding copy; OOB rows are masked on writeback).
    batch2 = 260
    emb2 = jax.random.normal(k_x2, (batch2, INPUT_DIM), jnp.float32)
    out2 = jax.block_until_ready(discriminator_forward(emb2, params))
    ref2 = reference_forward(emb2, params)
    assert out2.shape == (batch2, NUM_INSTRUMENT_CLASSES)
    assert jnp.allclose(out2, ref2, atol=1e-5, rtol=1e-5)

    print("KERNEL_OK")
</pallas_src>

<mosaic_0001>
module attributes {stable_mosaic.version = 11 : i64} {
  func.func @_mlp_kernel(%arg0: i32, %arg1: memref<8x256xf32, #tpu.memory_space<vmem>>, %arg2: memref<256x128xf32, #tpu.memory_space<vmem>>, %arg3: memref<1x128xf32, #tpu.memory_space<vmem>>, %arg4: memref<128x128xf32, #tpu.memory_space<vmem>>, %arg5: memref<1x128xf32, #tpu.memory_space<vmem>>, %arg6: memref<128x2xf32, #tpu.memory_space<vmem>>, %arg7: memref<1x2xf32, #tpu.memory_space<vmem>>, %arg8: memref<8x2xf32, #tpu.memory_space<vmem>>) attributes {dimension_semantics = [#tpu.dimension_semantics<parallel>], iteration_bounds = array<i64: 1>, scalar_prefetch = 0 : i64, scratch_operands = 0 : i64, tpu.core_type = #tpu.core_type<tc>, window_params = [{transform_indices = @transform_0, window_bounds = array<i64: 8, 256>}, {pipeline_mode = #tpu.pipeline_mode<synchronous>, transform_indices = @transform_1, window_bounds = array<i64: 256, 128>}, {pipeline_mode = #tpu.pipeline_mode<synchronous>, transform_indices = @transform_2, window_bounds = array<i64: 1, 128>}, {pipeline_mode = #tpu.pipeline_mode<synchronous>, transform_indices = @transform_3, window_bounds = array<i64: 128, 128>}, {pipeline_mode = #tpu.pipeline_mode<synchronous>, transform_indices = @transform_4, window_bounds = array<i64: 1, 128>}, {pipeline_mode = #tpu.pipeline_mode<synchronous>, transform_indices = @transform_5, window_bounds = array<i64: 128, 2>}, {pipeline_mode = #tpu.pipeline_mode<synchronous>, transform_indices = @transform_6, window_bounds = array<i64: 1, 2>}, {transform_indices = @transform_7, window_bounds = array<i64: 8, 2>}]} {
    %c0 = arith.constant 0 : index
    %c0_0 = arith.constant 0 : index
    %0 = vector.load %arg1[%c0, %c0_0] : memref<8x256xf32, #tpu.memory_space<vmem>>, vector<8x256xf32>
    %c0_1 = arith.constant 0 : index
    %c0_2 = arith.constant 0 : index
    %1 = vector.load %arg2[%c0_1, %c0_2] : memref<256x128xf32, #tpu.memory_space<vmem>>, vector<256x128xf32>
    %cst = arith.constant dense<0.000000e+00> : vector<8x128xf32>
    %2 = tpu.matmul %0, %1, %cst {dimension_numbers = #tpu.dot_dimension_numbers<[1], [0], [0], [1], [0, 0, 1, 1], [], []>} : vector<8x256xf32>, vector<256x128xf32>, vector<8x128xf32> -> vector<8x128xf32>
    %c0_3 = arith.constant 0 : index
    %c0_4 = arith.constant 0 : index
    %3 = vector.load %arg3[%c0_3, %c0_4] : memref<1x128xf32, #tpu.memory_space<vmem>>, vector<1x128xf32>
    %4 = vector.broadcast %3 : vector<1x128xf32> to vector<8x128xf32>
    %5 = arith.addf %2, %4 : vector<8x128xf32>
    %cst_5 = arith.constant 0.000000e+00 : f32
    %6 = vector.broadcast %cst_5 : f32 to vector<8x128xf32>
    %7 = arith.maximumf %5, %6 : vector<8x128xf32>
    %c0_6 = arith.constant 0 : index
    %c0_7 = arith.constant 0 : index
    %8 = vector.load %arg4[%c0_6, %c0_7] : memref<128x128xf32, #tpu.memory_space<vmem>>, vector<128x128xf32>
    %cst_8 = arith.constant dense<0.000000e+00> : vector<8x128xf32>
    %9 = tpu.matmul %7, %8, %cst_8 {dimension_numbers = #tpu.dot_dimension_numbers<[1], [0], [0], [1], [0, 0, 1, 1], [], []>} : vector<8x128xf32>, vector<128x128xf32>, vector<8x128xf32> -> vector<8x128xf32>
    %c0_9 = arith.constant 0 : index
    %c0_10 = arith.constant 0 : index
    %10 = vector.load %arg5[%c0_9, %c0_10] : memref<1x128xf32, #tpu.memory_space<vmem>>, vector<1x128xf32>
    %11 = vector.broadcast %10 : vector<1x128xf32> to vector<8x128xf32>
    %12 = arith.addf %9, %11 : vector<8x128xf32>
    %cst_11 = arith.constant 0.000000e+00 : f32
    %13 = vector.broadcast %cst_11 : f32 to vector<8x128xf32>
    %14 = arith.maximumf %12, %13 : vector<8x128xf32>
    %c0_12 = arith.constant 0 : index
    %c0_13 = arith.constant 0 : index
    %15 = vector.load %arg6[%c0_12, %c0_13] : memref<128x2xf32, #tpu.memory_space<vmem>>, vector<128x2xf32>
    %cst_14 = arith.constant dense<0.000000e+00> : vector<8x2xf32>
    %16 = tpu.matmul %14, %15, %cst_14 {dimension_numbers = #tpu.dot_dimension_numbers<[1], [0], [0], [1], [0, 0, 1, 1], [], []>} : vector<8x128xf32>, vector<128x2xf32>, vector<8x2xf32> -> vector<8x2xf32>
    %c0_15 = arith.constant 0 : index
    %c0_16 = arith.constant 0 : index
    %17 = vector.load %arg7[%c0_15, %c0_16] : memref<1x2xf32, #tpu.memory_space<vmem>>, vector<1x2xf32>
    %18 = vector.broadcast %17 : vector<1x2xf32> to vector<8x2xf32>
    %19 = arith.addf %16, %18 : vector<8x2xf32>
    %c0_17 = arith.constant 0 : index
    %c0_18 = arith.constant 0 : index
    %20 = vector.load %arg8[%c0_17, %c0_18] : memref<8x2xf32, #tpu.memory_space<vmem>>, vector<8x2xf32>
    tpu.vector_store %arg8[%c0_17, %c0_18], %19 {strides = array<i32>} : memref<8x2xf32, #tpu.memory_space<vmem>>, vector<8x2xf32>,
    return
  }
  func.func @transform_0(%arg0: i32) -> (i32, i32) {
    %c0_i32 = arith.constant 0 : i32
    %c0_i32_0 = arith.constant 0 : i32
    return %arg0, %c0_i32 : i32, i32
  }
  func.func @transform_1(%arg0: i32) -> (i32, i32) {
    %c0_i32 = arith.constant 0 : i32
    %c0_i32_0 = arith.constant 0 : i32
    %c0_i32_1 = arith.constant 0 : i32
    return %c0_i32, %c0_i32_0 : i32, i32
  }
  func.func @transform_2(%arg0: i32) -> (i32, i32) {
    %c0_i32 = arith.constant 0 : i32
    %c0_i32_0 = arith.constant 0 : i32
    %c0_i32_1 = arith.constant 0 : i32
    return %c0_i32, %c0_i32_0 : i32, i32
  }
  func.func @transform_3(%arg0: i32) -> (i32, i32) {
    %c0_i32 = arith.constant 0 : i32
    %c0_i32_0 = arith.constant 0 : i32
    %c0_i32_1 = arith.constant 0 : i32
    return %c0_i32, %c0_i32_0 : i32, i32
  }
  func.func @transform_4(%arg0: i32) -> (i32, i32) {
    %c0_i32 = arith.constant 0 : i32
    %c0_i32_0 = arith.constant 0 : i32
    %c0_i32_1 = arith.constant 0 : i32
    return %c0_i32, %c0_i32_0 : i32, i32
  }
  func.func @transform_5(%arg0: i32) -> (i32, i32) {
    %c0_i32 = arith.constant 0 : i32
    %c0_i32_0 = arith.constant 0 : i32
    %c0_i32_1 = arith.constant 0 : i32
    return %c0_i32, %c0_i32_0 : i32, i32
  }
  func.func @transform_6(%arg0: i32) -> (i32, i32) {
    %c0_i32 = arith.constant 0 : i32
    %c0_i32_0 = arith.constant 0 : i32
    %c0_i32_1 = arith.constant 0 : i32
    return %c0_i32, %c0_i32_0 : i32, i32
  }
  func.func @transform_7(%arg0: i32) -> (i32, i32) {
    %c0_i32 = arith.constant 0 : i32
    %c0_i32_0 = arith.constant 0 : i32
    return %arg0, %c0_i32 : i32, i32
  }
}

</mosaic_0001>

<llo_original>
// kernel: discriminator_forward.1
$region0: #{discriminator_forward.1}
  #allocation0 [shape = 'u32[]', space=smem, size = 0x4, offset = 0x4, fixed_abs, tag = 'smem constant byte address 0x4 - core index']
  #allocation1 [shape = 'u32[144,128]{1,0:T(1,128)}', space=vmem, size = 0x12000, scoped, tag = 'internal scratch']
  %s0 = inlined_call_operand.hbm [shape: f32[8,256], index: 0, kind: input, shape index: {}]
  %s1 = inlined_call_operand.hbm [shape: f32[256,128], index: 1, kind: input, shape index: {}]
  %s2 = inlined_call_operand.vmem [shape: f32[1,128], index: 2, kind: input, shape index: {}]
  %s3 = inlined_call_operand.vmem [shape: f32[128,128], index: 3, kind: input, shape index: {}]
  %s4 = inlined_call_operand.vmem [shape: f32[1,128], index: 4, kind: input, shape index: {}]
  %s5 = inlined_call_operand.vmem [shape: f32[128,2], index: 5, kind: input, shape index: {}]
  %s6 = inlined_call_operand.vmem [shape: f32[1,2], index: 6, kind: input, shape index: {}]
  %s7 = inlined_call_operand.vmem [shape: f32[8,2], index: 7, kind: output, shape index: {}]
  %s8 = sld [smem:[#allocation0]]
  $region46: #{discriminator_forward.1} parent=0
    _
  %s10 = ssub.s32 1, %s8
  %s11 = scalar_select 0, %s10, %s8
  $region1: #{discriminator_forward.1} parent=0
    #allocation2 [shape = 'u8[8192]{0}', space=vmem, size = 0x2000, scoped, tag = 'input window, operand 0, single buffered']
    #allocation3 [shape = 's32[1]{0}', space=sflag, size = 0x4, scoped, tag = 'scoped memory for discriminator_forward.1']
    #allocation4 [shape = 'u8[131072]{0}', space=vmem, size = 0x20000, scoped, tag = 'input window, operand 1, single buffered']
    #allocation5 [shape = 's32[1]{0}', space=sflag, size = 0x4, scoped, tag = 'scoped memory for discriminator_forward.1']
    %12 = vsyncpa [#allocation3], 0
    %13 = vsyncpa [#allocation5], 0
    // Predicated region
    $region2: #{discriminator_forward.1} parent=1 // pred_check
      _
    $region3: #{discriminator_forward.1} parent=1 // pred_check_branch
      %15 = sbr.rel (0) target = $region5
    $region4: #{discriminator_forward.1} parent=1 // pred_region
      %s17 = ssub.s32 256, 256
      %18 = vsyncadd [#allocation3], %s17
      %s20 = sshll.u32 [#allocation2], 4
      %s21 = int_to_ptr.vmem [resolvable:$true] %s20
      %23 = dma.hbm_to_vmem [thread:$0]  %s0, 256, %s21, [#allocation3]
    $region5: #{discriminator_forward.1} parent=1 // pred_fallthru
      _
    // Predicated region
    $region6: #{discriminator_forward.1} parent=1 // pred_check
      _
    $region7: #{discriminator_forward.1} parent=1 // pred_check_branch
      %25 = sbr.rel (0) target = $region9
    $region8: #{discriminator_forward.1} parent=1 // pred_region
      %s27 = ssub.s32 4096, 4096
      %28 = vsyncadd [#allocation5], %s27
      %s29 = sshll.u32 [#allocation4], 4
      %s30 = int_to_ptr.vmem [resolvable:$true] %s29
      %35 = dma.hbm_to_vmem [thread:$0]  %s1, 4096, %s30, [#allocation5], 128, 128, 8
    $region9: #{discriminator_forward.1} parent=1 // pred_fallthru
      _
    // Predicated region
    $region10: #{discriminator_forward.1} parent=1 // pred_check
      _
    $region11: #{discriminator_forward.1} parent=1 // pred_check_branch
      %37 = sbr.rel (0) target = $region13
    $region12: #{discriminator_forward.1} parent=1 // pred_region
      _
    $region13: #{discriminator_forward.1} parent=1 // pred_fallthru
      _
    // Predicated region
    $region14: #{discriminator_forward.1} parent=1 // pred_check
      _
    $region15: #{discriminator_forward.1} parent=1 // pred_check_branch
      %39 = sbr.rel (0) target = $region17
    $region16: #{discriminator_forward.1} parent=1 // pred_region
      _
    $region17: #{discriminator_forward.1} parent=1 // pred_fallthru
      _
    // Predicated region
    $region18: #{discriminator_forward.1} parent=1 // pred_check
      _
    $region19: #{discriminator_forward.1} parent=1 // pred_check_branch
      %41 = sbr.rel (0) target = $region21
    $region20: #{discriminator_forward.1} parent=1 // pred_region
      _
    $region21: #{discriminator_forward.1} parent=1 // pred_fallthru
      _
    // Predicated region
    $region22: #{discriminator_forward.1} parent=1 // pred_check
      _
    $region23: #{discriminator_forward.1} parent=1 // pred_check_branch
      %43 = sbr.rel (0) target = $region25
    $region24: #{discriminator_forward.1} parent=1 // pred_region
      _
    $region25: #{discriminator_forward.1} parent=1 // pred_fallthru
      _
    // Predicated region
    $region26: #{discriminator_forward.1} parent=1 // pred_check
      _
    $region27: #{discriminator_forward.1} parent=1 // pred_check_branch
      %45 = sbr.rel (0) target = $region29
    $region28: #{discriminator_forward.1} parent=1 // pred_region
      _
    $region29: #{discriminator_forward.1} parent=1 // pred_fallthru
      _
    // Predicated region
    $region30: #{discriminator_forward.1} parent=1 // pred_check
      _
    $region31: #{discriminator_forward.1} parent=1 // pred_check_branch
      %47 = sbr.rel (0) target = $region33
    $region32: #{discriminator_forward.1} parent=1 // pred_region
      %48 = dma.done [#allocation3], 256
    $region33: #{discriminator_forward.1} parent=1 // pred_fallthru
      _
    // Predicated region
    $region34: #{discriminator_forward.1} parent=1 // pred_check
      _
    $region35: #{discriminator_forward.1} parent=1 // pred_check_branch
      %50 = sbr.rel (0) target = $region37
    $region36: #{discriminator_forward.1} parent=1 // pred_region
      %51 = dma.done [#allocation5], 4096
    $region37: #{discriminator_forward.1} parent=1 // pred_fallthru
      _
    %v52 = vld [vmem:[#allocation2] sm:$0xff]
    %v53 = vld [vmem:[#allocation2 + $0x8] sm:$0xff]
    %v54 = vld [vmem:[#allocation4] sm:$0xff]
    %v55 = vld [vmem:[#allocation4 + $0x8] sm:$0xff]
    %v56 = vld [vmem:[#allocation4 + $0x10] sm:$0xff]
    %v57 = vld [vmem:[#allocation4 + $0x18] sm:$0xff]
    %v58 = vld [vmem:[#allocation4 + $0x20] sm:$0xff]
    %v59 = vld [vmem:[#allocation4 + $0x28] sm:$0xff]
    %v60 = vld [vmem:[#allocation4 + $0x30] sm:$0xff]
    %v61 = vld [vmem:[#allocation4 + $0x38] sm:$0xff]
    %v62 = vld [vmem:[#allocation4 + $0x40] sm:$0xff]
    %v63 = vld [vmem:[#allocation4 + $0x48] sm:$0xff]
    %v64 = vld [vmem:[#allocation4 + $0x50] sm:$0xff]
    %v65 = vld [vmem:[#allocation4 + $0x58] sm:$0xff]
    %v66 = vld [vmem:[#allocation4 + $0x60] sm:$0xff]
    %v67 = vld [vmem:[#allocation4 + $0x68] sm:$0xff]
    %v68 = vld [vmem:[#allocation4 + $0x70] sm:$0xff]
    %v69 = vld [vmem:[#allocation4 + $0x78] sm:$0xff]
    %v70 = vld [vmem:[#allocation4 + $0x80] sm:$0xff]
    %v71 = vld [vmem:[#allocation4 + $0x88] sm:$0xff]
    %v72 = vld [vmem:[#allocation4 + $0x90] sm:$0xff]
    %v73 = vld [vmem:[#allocation4 + $0x98] sm:$0xff]
    %v74 = vld [vmem:[#allocation4 + $0xa0] sm:$0xff]
    %v75 = vld [vmem:[#allocation4 + $0xa8] sm:$0xff]
    %v76 = vld [vmem:[#allocation4 + $0xb0] sm:$0xff]
    %v77 = vld [vmem:[#allocation4 + $0xb8] sm:$0xff]
    %v78 = vld [vmem:[#allocation4 + $0xc0] sm:$0xff]
    %v79 = vld [vmem:[#allocation4 + $0xc8] sm:$0xff]
    %v80 = vld [vmem:[#allocation4 + $0xd0] sm:$0xff]
    %v81 = vld [vmem:[#allocation4 + $0xd8] sm:$0xff]
    %v82 = vld [vmem:[#allocation4 + $0xe0] sm:$0xff]
    %v83 = vld [vmem:[#allocation4 + $0xe8] sm:$0xff]
    %v84 = vld [vmem:[#allocation4 + $0xf0] sm:$0xff]
    %v85 = vld [vmem:[#allocation4 + $0xf8] sm:$0xff]
    %v86 = vld [vmem:[%s2] sm:$0x1]
    %v88 = vlaneseq
    %v89 = vshrl.u32 %v88, 7
    %v90 = vsub.s32 0, %v89
    %v91 = vrot.slane %v86, %v90
    %93 = vmatprep.subr.mxu0 0.0
    %94 = vmatpush1.msra.mxu0 %v54
    %95 = vmatprep.subr.mxu0 0.0
    %96 = vmatpush1.msra.mxu0 %v55
    %97 = vmatprep.subr.mxu0 0.0
    %98 = vmatpush1.msra.mxu0 %v56
    %99 = vmatprep.subr.mxu0 0.0
    %100 = vmatpush1.msra.mxu0 %v57
    %101 = vmatprep.subr.mxu0 0.0
    %102 = vmatpush1.msra.mxu0 %v58
    %103 = vmatprep.subr.mxu0 0.0
    %104 = vmatpush1.msra.mxu0 %v59
    %105 = vmatprep.subr.mxu0 0.0
    %106 = vmatpush1.msra.mxu0 %v60
    %107 = vmatprep.subr.mxu0 0.0
    %108 = vmatpush1.msra.mxu0 %v61
    %109 = vmatprep.subr.mxu0 0.0
    %110 = vmatpush1.msra.mxu0 %v62
    %111 = vmatprep.subr.mxu0 0.0
    %112 = vmatpush1.msra.mxu0 %v63
    %113 = vmatprep.subr.mxu0 0.0
    %114 = vmatpush1.msra.mxu0 %v64
    %115 = vmatprep.subr.mxu0 0.0
    %116 = vmatpush1.msra.mxu0 %v65
    %117 = vmatprep.subr.mxu0 0.0
    %118 = vmatpush1.msra.mxu0 %v66
    %119 = vmatprep.subr.mxu0 0.0
    %120 = vmatpush1.msra.mxu0 %v67
    %121 = vmatprep.subr.mxu0 0.0
    %122 = vmatpush1.msra.mxu0 %v68
    %123 = vmatprep.subr.mxu0 0.0
    %124 = vmatpush1.msra.mxu0 %v69
    %125 = vmatprep.subr.mxu0 0.0
    %126 = vmatpush1.msra.mxu0 %v70
    %127 = vmatprep.subr.mxu0 0.0
    %128 = vmatpush1.msra.mxu0 %v71
    %129 = vmatprep.subr.mxu0 0.0
    %130 = vmatpush1.msra.mxu0 %v72
    %131 = vmatprep.subr.mxu0 0.0
    %132 = vmatpush1.msra.mxu0 %v73
    %133 = vmatprep.subr.mxu0 0.0
    %134 = vmatpush1.msra.mxu0 %v74
    %135 = vmatprep.subr.mxu0 0.0
    %136 = vmatpush1.msra.mxu0 %v75
    %137 = vmatprep.subr.mxu0 0.0
    %138 = vmatpush1.msra.mxu0 %v76
    %139 = vmatprep.subr.mxu0 0.0
    %140 = vmatpush1.msra.mxu0 %v77
    %141 = vmatprep.subr.mxu0 0.0
    %142 = vmatpush1.msra.mxu0 %v78
    %143 = vmatprep.subr.mxu0 0.0
    %144 = vmatpush1.msra.mxu0 %v79
    %145 = vmatprep.subr.mxu0 0.0
    %146 = vmatpush1.msra.mxu0 %v80
    %147 = vmatprep.subr.mxu0 0.0
    %148 = vmatpush1.msra.mxu0 %v81
    %149 = vmatprep.subr.mxu0 0.0
    %150 = vmatpush1.msra.mxu0 %v82
    %151 = vmatprep.subr.mxu0 0.0
    %152 = vmatpush1.msra.mxu0 %v83
    %153 = vmatprep.subr.mxu0 0.0
    %154 = vmatpush1.msra.mxu0 %v84
    %155 = vmatprep.subr.mxu0 0.0
    %156 = vmatpush1.msra.mxu0 %v85
    %157 = vmatprep.mubr.f32.mxu0 %v53
    %158 = vmatmul.mubr.f32.gmra.mrb[0].mxu0 %v52
    %v159 = vpop.f32.mrb[0].mxu0
    %v160 = vadd.f32 %v91, %v159
    %v161 = vpop.f32.mrb[0].mxu0
    %162 = vdwg.mxu0
    %v163 = vmax.f32 %v160, 0.0
    %v164 = vld [vmem:[%s3] sm:$0xff]
    %v165 = vld [vmem:[%s3 + $0x8] sm:$0xff]
    %v166 = vld [vmem:[%s3 + $0x10] sm:$0xff]
    %v167 = vld [vmem:[%s3 + $0x18] sm:$0xff]
    %v168 = vld [vmem:[%s3 + $0x20] sm:$0xff]
    %v169 = vld [vmem:[%s3 + $0x28] sm:$0xff]
    %v170 = vld [vmem:[%s3 + $0x30] sm:$0xff]
    %v171 = vld [vmem:[%s3 + $0x38] sm:$0xff]
    %v172 = vld [vmem:[%s3 + $0x40] sm:$0xff]
    %v173 = vld [vmem:[%s3 + $0x48] sm:$0xff]
    %v174 = vld [vmem:[%s3 + $0x50] sm:$0xff]
    %v175 = vld [vmem:[%s3 + $0x58] sm:$0xff]
    %v176 = vld [vmem:[%s3 + $0x60] sm:$0xff]
    %v177 = vld [vmem:[%s3 + $0x68] sm:$0xff]
    %v178 = vld [vmem:[%s3 + $0x70] sm:$0xff]
    %v179 = vld [vmem:[%s3 + $0x78] sm:$0xff]
    %v180 = vld [vmem:[%s4] sm:$0x1]
    %v182 = vlaneseq
    %v183 = vshrl.u32 %v182, 7
    %v184 = vsub.s32 0, %v183
    %v185 = vrot.slane %v180, %v184
    %187 = vmatprep.subr.mxu0 0.0
    %188 = vmatpush1.msra.mxu0 %v164
    %189 = vmatprep.subr.mxu0 0.0
    %190 = vmatpush1.msra.mxu0 %v165
    %191 = vmatprep.subr.mxu0 0.0
    %192 = vmatpush1.msra.mxu0 %v166
    %193 = vmatprep.subr.mxu0 0.0
    %194 = vmatpush1.msra.mxu0 %v167
    %195 = vmatprep.subr.mxu0 0.0
    %196 = vmatpush1.msra.mxu0 %v168
    %197 = vmatprep.subr.mxu0 0.0
    %198 = vmatpush1.msra.mxu0 %v169
    %199 = vmatprep.subr.mxu0 0.0
    %200 = vmatpush1.msra.mxu0 %v170
    %201 = vmatprep.subr.mxu0 0.0
    %202 = vmatpush1.msra.mxu0 %v171
    %203 = vmatprep.subr.mxu0 0.0
    %204 = vmatpush1.msra.mxu0 %v172
    %205 = vmatprep.subr.mxu0 0.0
    %206 = vmatpush1.msra.mxu0 %v173
    %207 = vmatprep.subr.mxu0 0.0
    %208 = vmatpush1.msra.mxu0 %v174
    %209 = vmatprep.subr.mxu0 0.0
    %210 = vmatpush1.msra.mxu0 %v175
    %211 = vmatprep.subr.mxu0 0.0
    %212 = vmatpush1.msra.mxu0 %v176
    %213 = vmatprep.subr.mxu0 0.0
    %214 = vmatpush1.msra.mxu0 %v177
    %215 = vmatprep.subr.mxu0 0.0
    %216 = vmatpush1.msra.mxu0 %v178
    %217 = vmatprep.subr.mxu0 0.0
    %218 = vmatpush1.msra.mxu0 %v179
    %219 = vmatprep.subr.mxu0 0.0
    %220 = vmatpush1.msra.mxu0 0.0
    %221 = vmatprep.subr.mxu0 0.0
    %222 = vmatpush1.msra.mxu0 0.0
    %223 = vmatprep.subr.mxu0 0.0
    %224 = vmatpush1.msra.mxu0 0.0
    %225 = vmatprep.subr.mxu0 0.0
    %226 = vmatpush1.msra.mxu0 0.0
    %227 = vmatprep.subr.mxu0 0.0
    %228 = vmatpush1.msra.mxu0 0.0
    %229 = vmatprep.subr.mxu0 0.0
    %230 = vmatpush1.msra.mxu0 0.0
    %231 = vmatprep.subr.mxu0 0.0
    %232 = vmatpush1.msra.mxu0 0.0
    %233 = vmatprep.subr.mxu0 0.0
    %234 = vmatpush1.msra.mxu0 0.0
    %235 = vmatprep.subr.mxu0 0.0
    %236 = vmatpush1.msra.mxu0 0.0
    %237 = vmatprep.subr.mxu0 0.0
    %238 = vmatpush1.msra.mxu0 0.0
    %239 = vmatprep.subr.mxu0 0.0
    %240 = vmatpush1.msra.mxu0 0.0
    %241 = vmatprep.subr.mxu0 0.0
    %242 = vmatpush1.msra.mxu0 0.0
    %243 = vmatprep.subr.mxu0 0.0
    %244 = vmatpush1.msra.mxu0 0.0
    %245 = vmatprep.subr.mxu0 0.0
    %246 = vmatpush1.msra.mxu0 0.0
    %247 = vmatprep.subr.mxu0 0.0
    %248 = vmatpush1.msra.mxu0 0.0
    %249 = vmatprep.subr.mxu0 0.0
    %250 = vmatpush1.msra.mxu0 0.0
    %251 = vmatprep.mubr.f32.mxu0 0.0
    %252 = vmatmul.mubr.f32.gmra.mrb[0].mxu0 %v163
    %v253 = vpop.f32.mrb[0].mxu0
    %v254 = vadd.f32 %v185, %v253
    %v255 = vpop.f32.mrb[0].mxu0
    %256 = vdwg.mxu0
    %v257 = vmax.f32 %v254, 0.0
    %v258 = vld [vmem:[%s5] sm:$0xff]
    %v259 = vld [vmem:[%s5 + $0x8] sm:$0xff]
    %v260 = vld [vmem:[%s5 + $0x10] sm:$0xff]
    %v261 = vld [vmem:[%s5 + $0x18] sm:$0xff]
    %v262 = vld [vmem:[%s5 + $0x20] sm:$0xff]
    %v263 = vld [vmem:[%s5 + $0x28] sm:$0xff]
    %v264 = vld [vmem:[%s5 + $0x30] sm:$0xff]
    %v265 = vld [vmem:[%s5 + $0x38] sm:$0xff]
    %v266 = vld [vmem:[%s5 + $0x40] sm:$0xff]
    %v267 = vld [vmem:[%s5 + $0x48] sm:$0xff]
    %v268 = vld [vmem:[%s5 + $0x50] sm:$0xff]
    %v269 = vld [vmem:[%s5 + $0x58] sm:$0xff]
    %v270 = vld [vmem:[%s5 + $0x60] sm:$0xff]
    %v271 = vld [vmem:[%s5 + $0x68] sm:$0xff]
    %v272 = vld [vmem:[%s5 + $0x70] sm:$0xff]
    %v273 = vld [vmem:[%s5 + $0x78] sm:$0xff]
    %v274 = vld [vmem:[%s6] sm:$0x1]
    %v276 = vlaneseq
    %v277 = vshrl.u32 %v276, 7
    %v278 = vsub.s32 0, %v277
    %v279 = vrot.slane %v274, %v278
    %281 = vmatprep.subr.mxu0 0.0
    %282 = vmatpush1.msra.mxu0 %v258
    %283 = vmatprep.subr.mxu0 0.0
    %284 = vmatpush1.msra.mxu0 %v259
    %285 = vmatprep.subr.mxu0 0.0
    %286 = vmatpush1.msra.mxu0 %v260
    %287 = vmatprep.subr.mxu0 0.0
    %288 = vmatpush1.msra.mxu0 %v261
    %289 = vmatprep.subr.mxu0 0.0
    %290 = vmatpush1.msra.mxu0 %v262
    %291 = vmatprep.subr.mxu0 0.0
    %292 = vmatpush1.msra.mxu0 %v263
    %293 = vmatprep.subr.mxu0 0.0
    %294 = vmatpush1.msra.mxu0 %v264
    %295 = vmatprep.subr.mxu0 0.0
    %296 = vmatpush1.msra.mxu0 %v265
    %297 = vmatprep.subr.mxu0 0.0
    %298 = vmatpush1.msra.mxu0 %v266
    %299 = vmatprep.subr.mxu0 0.0
    %300 = vmatpush1.msra.mxu0 %v267
    %301 = vmatprep.subr.mxu0 0.0
    %302 = vmatpush1.msra.mxu0 %v268
    %303 = vmatprep.subr.mxu0 0.0
    %304 = vmatpush1.msra.mxu0 %v269
    %305 = vmatprep.subr.mxu0 0.0
    %306 = vmatpush1.msra.mxu0 %v270
    %307 = vmatprep.subr.mxu0 0.0
    %308 = vmatpush1.msra.mxu0 %v271
    %309 = vmatprep.subr.mxu0 0.0
    %310 = vmatpush1.msra.mxu0 %v272
    %311 = vmatprep.subr.mxu0 0.0
    %312 = vmatpush1.msra.mxu0 %v273
    %313 = vmatprep.subr.mxu0 0.0
    %314 = vmatpush1.msra.mxu0 0.0
    %315 = vmatprep.subr.mxu0 0.0
    %316 = vmatpush1.msra.mxu0 0.0
    %317 = vmatprep.subr.mxu0 0.0
    %318 = vmatpush1.msra.mxu0 0.0
    %319 = vmatprep.subr.mxu0 0.0
    %320 = vmatpush1.msra.mxu0 0.0
    %321 = vmatprep.subr.mxu0 0.0
    %322 = vmatpush1.msra.mxu0 0.0
    %323 = vmatprep.subr.mxu0 0.0
    %324 = vmatpush1.msra.mxu0 0.0
    %325 = vmatprep.subr.mxu0 0.0
    %326 = vmatpush1.msra.mxu0 0.0
    %327 = vmatprep.subr.mxu0 0.0
    %328 = vmatpush1.msra.mxu0 0.0
    %329 = vmatprep.subr.mxu0 0.0
    %330 = vmatpush1.msra.mxu0 0.0
    %331 = vmatprep.subr.mxu0 0.0
    %332 = vmatpush1.msra.mxu0 0.0
    %333 = vmatprep.subr.mxu0 0.0
    %334 = vmatpush1.msra.mxu0 0.0
    %335 = vmatprep.subr.mxu0 0.0
    %336 = vmatpush1.msra.mxu0 0.0
    %337 = vmatprep.subr.mxu0 0.0
    %338 = vmatpush1.msra.mxu0 0.0
    %339 = vmatprep.subr.mxu0 0.0
    %340 = vmatpush1.msra.mxu0 0.0
    %341 = vmatprep.subr.mxu0 0.0
    %342 = vmatpush1.msra.mxu0 0.0
    %343 = vmatprep.subr.mxu0 0.0
    %344 = vmatpush1.msra.mxu0 0.0
    %345 = vmatprep.mubr.f32.mxu0 0.0
    %346 = vmatmul.mubr.f32.gmra.mrb[0].mxu0 %v257
    %v347 = vpop.f32.mrb[0].mxu0
    %v348 = vadd.f32 %v279, %v347
    %v349 = vpop.f32.mrb[0].mxu0
    %350 = vdwg.mxu0
    %vm351 = vcmask 15360
    %352 = vst.msk [vmem:[%s7] sm:$0xff] %vm351, %v348
    // Predicated region
    $region38: #{discriminator_forward.1} parent=1 // pred_check
      _
    $region39: #{discriminator_forward.1} parent=1 // pred_check_branch
      %354 = sbr.rel (0) target = $region41
    $region40: #{discriminator_forward.1} parent=1 // pred_region
      _
    $region41: #{discriminator_forward.1} parent=1 // pred_fallthru
      _
    // Predicated region
    $region42: #{discriminator_forward.1} parent=1 // pred_check
      _
    $region43: #{discriminator_forward.1} parent=1 // pred_check_branch
      %356 = sbr.rel (0) target = $region45
    $region44: #{discriminator_forward.1} parent=1 // pred_region
      _
    $region45: #{discriminator_forward.1} parent=1 // pred_fallthru
      _
    %357 = vsyncpa [#allocation3], 1
    %358 = vsyncpa [#allocation5], 1

</llo_original>
